<compile_context>
chip_gen: v7x
topology: tpu7x:2x2x1
jax: 0.10.0
libtpu: 0.0.40
codegen_flags: <defaults>
</compile_context>

<pallas_src>
import math

import jax
import jax.numpy as jnp
from jax.experimental import pallas as pl
from jax.experimental.pallas import tpu as pltpu

# ---- dims fixed by the PyTorch module ------------------------------------
XCEPTION_DIM = 2048     # timm xception with num_classes=0 -> pooled 2048-d features
SWIN_DIM = 512          # timm swin head configured with num_classes=512
FUSION_DIM = 1024
NUM_CLASSES = 2

# ---- proxy-backbone / tiling dims -----------------------------------------
CONV_KH = CONV_KW = 3   # 3x3 stem conv (pad=1, stride=1) for the xception-like path
PATCH = 4               # 4x4 / stride-4 patch embed for the swin-like path
EMBED_DIM = 128

LANE = 128
OUT_PAD = LANE                 # lane-dense logits block; slice first NUM_CLASSES
ROW_TILE_TARGET = 1024         # im2col/patch rows per reduction step
COL_TILE_TARGET = 512          # output-feature tile (parallel grid axis)


def _round_up(n, m):
    return ((n + m - 1) // m) * m


def _col_tile(c, target=COL_TILE_TARGET):
    """Largest divisor of c that is a multiple of 128 and <= target (fallback c)."""
    if c <= target:
        return c
    t = target
    while t >= 128:
        if c % t == 0:
            return t
        t -= 128
    return c


def _vmem_limit_bytes():
    """~3/4 of physical VMEM, clamped to [32, 96] MiB (48 MiB on v7x)."""
    try:
        cap = int(pltpu.get_tpu_info().vmem_capacity_bytes)
    except Exception:
        cap = 64 * 1024 * 1024
    return max(32 * 1024 * 1024, min((cap * 3) // 4, 96 * 1024 * 1024))


_VMEM_LIMIT = _vmem_limit_bytes()


# ===========================================================================
# Pallas kernels
# ===========================================================================
def _make_backbone_kernel(inv_rows, pad_rows, activation):
    """Proxy backbone: mean_rows(activation(patches @ W + b)).

    Grid = (B, C_tiles, R_tiles); the row axis is an 'arbitrary' reduction into
    an (8, C_TILE) f32 VMEM accumulator (pure VPU adds per step); the 8->1
    cross-sublane reduce + 1/rows scale + zero-pad-row bias correction happen
    once in the finalize branch.
    """
    def kernel(patch_ref, w_ref, b_ref, out_ref, acc_ref):
        r = pl.program_id(2)

        @pl.when(r == 0)
        def _init():
            acc_ref[...] = jnp.zeros_like(acc_ref)

        # (TILE, Kp) bf16 @ (Kp, C_TILE) bf16 -> f32 on the MXU
        act = jnp.dot(patch_ref[0], w_ref[...], preferred_element_type=jnp.float32)
        act = activation(act + b_ref[...])
        rt = act.shape[0]
        # fold rows into 8-sublane groups: vreg-aligned elementwise adds only
        acc_ref[...] += jnp.sum(act.reshape(rt // 8, 8, act.shape[-1]), axis=0)

        @pl.when(r == pl.num_programs(2) - 1)
        def _finalize():
            total = jnp.sum(acc_ref[...], axis=0, keepdims=True)
            if pad_rows:
                # zero-padded patch rows each contributed activation(bias); exact fix.
                total = total - float(pad_rows) * activation(b_ref[...])
            out_ref[0] = (total * inv_rows).astype(out_ref.dtype)

    return kernel


def _fusion_head_kernel(xf_ref, pooled_ref, wh_ref, bh_ref,
                        wxf_ref, wsf_ref, bf_ref, out_ref):
    # swin 512-d head, batched over M=B rows
    sf = (jnp.dot(pooled_ref[...], wh_ref[...], preferred_element_type=jnp.float32)
          + bh_ref[...])
    # folded fc(feature_fusion(cat(xf, sf))):
    #   cat @ (W_fusion @ W_fc) + (b_fusion @ W_fc + b_fc)
    #   == xf @ Wxf + sf @ Wsf + b_fold         (weights lane-padded to 128)
    out_ref[...] = (
        jnp.dot(xf_ref[...], wxf_ref[...], preferred_element_type=jnp.float32)
        + jnp.dot(sf.astype(wsf_ref.dtype), wsf_ref[...],
                  preferred_element_type=jnp.float32)
        + bf_ref[...])


# ===========================================================================
# Pallas wrappers
# ===========================================================================
def _backbone_proxy(patches, w, b, activation):
    """patches: (B, R, Kp) bf16, w: (Kp, C) bf16, b: (1, C) f32 -> (B, C) f32."""
    B, R, K = patches.shape
    C = w.shape[1]

    row_tile = min(ROW_TILE_TARGET, _round_up(R, 8))
    r_steps = -(-R // row_tile)
    r_pad = r_steps * row_tile
    if r_pad != R:
        patches = jnp.pad(patches, ((0, 0), (0, r_pad - R), (0, 0)))

    c_tile = _col_tile(C)
    c_steps = C // c_tile

    kernel = _make_backbone_kernel(1.0 / R, r_pad - R, activation)
    out = pl.pallas_call(
        kernel,
        out_shape=jax.ShapeDtypeStruct((B, 1, C), jnp.float32),
        grid=(B, c_steps, r_steps),
        in_specs=[
            pl.BlockSpec((1, row_tile, K), lambda b_, c_, r_: (b_, r_, 0)),
            pl.BlockSpec((K, c_tile), lambda b_, c_, r_: (0, c_)),
            pl.BlockSpec((1, c_tile), lambda b_, c_, r_: (0, c_)),
        ],
        out_specs=pl.BlockSpec((1, 1, c_tile), lambda b_, c_, r_: (b_, 0, c_)),
        scratch_shapes=[pltpu.VMEM((8, c_tile), jnp.float32)],
        compiler_params=pltpu.CompilerParams(
            dimension_semantics=("parallel", "parallel", "arbitrary"),
            vmem_limit_bytes=_VMEM_LIMIT),
    )(patches, w, b)
    return out[:, 0, :]


def fusion_head(xf, pooled, w_head, b_head, wxf, wsf, b_fold):
    """Fused swin-head + folded (feature_fusion ∘ fc). Single grid step."""
    B = xf.shape[0]
    out = pl.pallas_call(
        _fusion_head_kernel,
        out_shape=jax.ShapeDtypeStruct((B, OUT_PAD), jnp.float32),
        grid=(1,),
        in_specs=[
            pl.BlockSpec((B, XCEPTION_DIM), lambda i: (0, 0)),
            pl.BlockSpec((B, EMBED_DIM), lambda i: (0, 0)),
            pl.BlockSpec((EMBED_DIM, SWIN_DIM), lambda i: (0, 0)),
            pl.BlockSpec((1, SWIN_DIM), lambda i: (0, 0)),
            pl.BlockSpec((XCEPTION_DIM, OUT_PAD), lambda i: (0, 0)),
            pl.BlockSpec((SWIN_DIM, OUT_PAD), lambda i: (0, 0)),
            pl.BlockSpec((1, OUT_PAD), lambda i: (0, 0)),
        ],
        out_specs=pl.BlockSpec((B, OUT_PAD), lambda i: (0, 0)),
        compiler_params=pltpu.CompilerParams(
            dimension_semantics=("arbitrary",),
            vmem_limit_bytes=32 * 1024 * 1024),
    )(xf, pooled, w_head, b_head, wxf, wsf, b_fold)
    return out[:, :NUM_CLASSES]


# ===========================================================================
# JAX glue: im2col / patchify / params / forward
# ===========================================================================
def im2col_3x3(x, k_pad):
    # x: [B, C, H, W], pad=1, stride=1 -> [B, H*W, k_pad] (K zero-padded)
    B, C, H, W = x.shape
    xp = jnp.pad(x, ((0, 0), (0, 0), (1, 1), (1, 1)))
    cols = [xp[:, :, dy:dy + H, dx:dx + W] for dy in range(3) for dx in range(3)]
    patches = jnp.stack(cols, axis=1)                       # [B, 9, C, H, W]
    patches = patches.transpose(0, 3, 4, 2, 1).reshape(B, H * W, C * 9)
    return jnp.pad(patches, ((0, 0), (0, 0), (0, k_pad - C * 9)))


def patchify_4x4(x, k_pad):
    # x: [B, C, H, W] -> [B, (H/4)*(W/4), k_pad] (K zero-padded)
    B, C, H, W = x.shape
    p = x.reshape(B, C, H // PATCH, PATCH, W // PATCH, PATCH)
    p = p.transpose(0, 2, 4, 1, 3, 5).reshape(
        B, (H // PATCH) * (W // PATCH), C * PATCH * PATCH)
    return jnp.pad(p, ((0, 0), (0, 0), (0, k_pad - C * PATCH * PATCH)))


def _xavier_uniform(key, fan_in, fan_out, pad_rows_to=None):
    bound = math.sqrt(6.0 / (fan_in + fan_out))
    w = jax.random.uniform(key, (fan_in, fan_out), jnp.float32, -bound, bound)
    if pad_rows_to is not None and pad_rows_to > fan_in:
        w = jnp.pad(w, ((0, pad_rows_to - fan_in), (0, 0)))   # zero rows for padded K
    return w


def init_params(key, in_channels=3):
    ks = jax.random.split(key, 5)
    k_conv = in_channels * CONV_KH * CONV_KW              # 27
    k_patch = in_channels * PATCH * PATCH                 # 48
    kp_conv = _round_up(k_conv, 32)                       # 32
    kp_patch = _round_up(k_patch, 64)                     # 64
    return {
        # xception-like proxy stem (K zero-padded rows)
        "w_conv": _xavier_uniform(ks[0], k_conv, XCEPTION_DIM, pad_rows_to=kp_conv),
        "b_conv": jnp.zeros((1, XCEPTION_DIM), jnp.float32),
        # swin-like proxy (patch embed + head producing 512-d, since num_classes=512)
        "w_emb": _xavier_uniform(ks[1], k_patch, EMBED_DIM, pad_rows_to=kp_patch),
        "b_emb": jnp.zeros((1, EMBED_DIM), jnp.float32),
        "w_head": _xavier_uniform(ks[2], EMBED_DIM, SWIN_DIM),
        "b_head": jnp.zeros((1, SWIN_DIM), jnp.float32),
        # module-defined fusion head (exact shapes from the PyTorch module)
        "w_fusion": _xavier_uniform(ks[3], XCEPTION_DIM + SWIN_DIM, FUSION_DIM),
        "b_fusion": jnp.zeros((1, FUSION_DIM), jnp.float32),
        "w_fc": _xavier_uniform(ks[4], FUSION_DIM, NUM_CLASSES),
        "b_fc": jnp.zeros((1, NUM_CLASSES), jnp.float32),
    }


def _fold_fusion_fc(params):
    """fc(feature_fusion(.)) has no intervening nonlinearity -> fold exactly."""
    w_fold = params["w_fusion"] @ params["w_fc"]                      # (2560, 2) f32
    b_fold = params["b_fusion"] @ params["w_fc"] + params["b_fc"]     # (1, 2) f32
    w_fold = jnp.pad(w_fold, ((0, 0), (0, OUT_PAD - NUM_CLASSES)))
    b_fold = jnp.pad(b_fold, ((0, 0), (0, OUT_PAD - NUM_CLASSES)))
    wxf = w_fold[:XCEPTION_DIM].astype(jnp.bfloat16)   # hits the xception features
    wsf = w_fold[XCEPTION_DIM:].astype(jnp.bfloat16)   # hits the swin features
    return wxf, wsf, b_fold


def hybrid_deepfake_detector(params, x):
    # x: [B, 3, H, W] (NCHW, PyTorch convention)
    bf16 = jnp.bfloat16
    kp_conv = params["w_conv"].shape[0]
    kp_patch = params["w_emb"].shape[0]

    p3 = im2col_3x3(x, kp_conv).astype(bf16)
    p4 = patchify_4x4(x, kp_patch).astype(bf16)

    # bf16 weights / activations streamed through the MXU; f32 accumulation in-kernel.
    xf = _backbone_proxy(p3, params["w_conv"].astype(bf16), params["b_conv"],
                         lambda a: jnp.maximum(a, 0.0))                   # (B, 2048)
    pooled = _backbone_proxy(p4, params["w_emb"].astype(bf16), params["b_emb"],
                             lambda a: jax.nn.gelu(a, approximate=True))  # (B, 128)

    wxf, wsf, b_fold = _fold_fusion_fc(params)

    return fusion_head(xf.astype(bf16), pooled.astype(bf16),
                       params["w_head"].astype(bf16), params["b_head"],
                       wxf, wsf, b_fold)


def reference_forward(params, x):
    # Pure-JAX reference: backbones mirror the kernels' bf16-in / f32-accumulate
    # numerics; the head is the *unfolded* module math (cat -> Linear -> Linear)
    # in f32, which the kernel's fold reproduces algebraically.
    bf16, f32 = jnp.bfloat16, jnp.float32
    kp_conv = params["w_conv"].shape[0]
    kp_patch = params["w_emb"].shape[0]
    p3 = im2col_3x3(x, kp_conv).astype(bf16)
    p4 = patchify_4x4(x, kp_patch).astype(bf16)

    acc = jnp.einsum("bpk,kc->bpc", p3, params["w_conv"].astype(bf16),
                     preferred_element_type=f32)
    xf = jnp.maximum(acc + params["b_conv"], 0.0).mean(axis=1)

    emb = jnp.einsum("bpk,kd->bpd", p4, params["w_emb"].astype(bf16),
                     preferred_element_type=f32)
    pooled = jax.nn.gelu(emb + params["b_emb"], approximate=True).mean(axis=1)

    sf = jnp.einsum("bd,dc->bc", pooled.astype(bf16), params["w_head"].astype(bf16),
                    preferred_element_type=f32) + params["b_head"]

    cat = jnp.concatenate([xf, sf], axis=1)
    fused = cat @ params["w_fusion"] + params["b_fusion"]
    logits = fused @ params["w_fc"] + params["b_fc"]
    return logits


# ===========================================================================
if __name__ == "__main__":
    key = jax.random.PRNGKey(0)
    k_x, k_p = jax.random.split(key)

    B, C, H, W = 2, 3, 16, 16
    x = jax.random.normal(k_x, (B, C, H, W), jnp.float32)
    params = init_params(k_p, in_channels=C)

    out = hybrid_deepfake_detector(params, x)
    out = jax.block_until_ready(out)

    ref = reference_forward(params, x)
    assert out.shape == (B, NUM_CLASSES), out.shape
    assert bool(jnp.allclose(out, ref, rtol=1e-2, atol=1e-2)), "mismatch vs JAX reference"

    print("KERNEL_OK")
</pallas_src>

<mosaic_0001>
module attributes {stable_mosaic.version = 11 : i64} {
  func.func @kernel(%arg0: i32, %arg1: i32, %arg2: i32, %arg3: memref<1x256x32xbf16, #tpu.memory_space<vmem>>, %arg4: memref<32x512xbf16, #tpu.memory_space<vmem>>, %arg5: memref<1x512xf32, #tpu.memory_space<vmem>>, %arg6: memref<1x1x512xf32, #tpu.memory_space<vmem>>, %arg7: memref<8x512xf32, #tpu.memory_space<vmem>>) attributes {dimension_semantics = [#tpu.dimension_semantics<parallel>, #tpu.dimension_semantics<parallel>, #tpu.dimension_semantics<arbitrary>], iteration_bounds = array<i64: 2, 4, 1>, scalar_prefetch = 0 : i64, scratch_operands = 1 : i64, tpu.core_type = #tpu.core_type<tc>, window_params = [{transform_indices = @transform_0, window_bounds = array<i64: 1, 256, 32>}, {transform_indices = @transform_1, window_bounds = array<i64: 32, 512>}, {transform_indices = @transform_2, window_bounds = array<i64: 1, 512>}, {transform_indices = @transform_3, window_bounds = array<i64: 1, 1, 512>}]} {
    %c0_i32 = arith.constant 0 : i32
    %0 = arith.cmpi eq, %arg2, %c0_i32 : i32
    %1 = arith.extui %0 : i1 to i32
    %c0_i32_0 = arith.constant 0 : i32
    %2 = arith.cmpi ne, %1, %c0_i32_0 : i32
    scf.if %2 {
      %cst_15 = arith.constant 0.000000e+00 : f32
      %20 = vector.broadcast %cst_15 : f32 to vector<8x512xf32>
      %c0_16 = arith.constant 0 : index
      %c0_17 = arith.constant 0 : index
      %21 = vector.load %arg7[%c0_16, %c0_17] : memref<8x512xf32, #tpu.memory_space<vmem>>, vector<8x512xf32>
      tpu.vector_store %arg7[%c0_16, %c0_17], %20 {strides = array<i32>} : memref<8x512xf32, #tpu.memory_space<vmem>>, vector<8x512xf32>,
    } else {
    }
    %c0 = arith.constant 0 : index
    %c0_1 = arith.constant 0 : index
    %c0_2 = arith.constant 0 : index
    %3 = vector.load %arg3[%c0, %c0_1, %c0_2] : memref<1x256x32xbf16, #tpu.memory_space<vmem>>, vector<1x256x32xbf16>
    %4 = vector.shape_cast %3 : vector<1x256x32xbf16> to vector<256x32xbf16>
    %c0_3 = arith.constant 0 : index
    %c0_4 = arith.constant 0 : index
    %5 = vector.load %arg4[%c0_3, %c0_4] : memref<32x512xbf16, #tpu.memory_space<vmem>>, vector<32x512xbf16>
    %cst = arith.constant dense<0.000000e+00> : vector<256x512xf32>
    %6 = tpu.matmul %4, %5, %cst {dimension_numbers = #tpu.dot_dimension_numbers<[1], [0], [0], [1], [0, 0, 1, 1], [], []>} : vector<256x32xbf16>, vector<32x512xbf16>, vector<256x512xf32> -> vector<256x512xf32>
    %c0_5 = arith.constant 0 : index
    %c0_6 = arith.constant 0 : index
    %7 = vector.load %arg5[%c0_5, %c0_6] : memref<1x512xf32, #tpu.memory_space<vmem>>, vector<1x512xf32>
    %8 = vector.broadcast %7 : vector<1x512xf32> to vector<256x512xf32>
    %9 = arith.addf %6, %8 : vector<256x512xf32>
    %cst_7 = arith.constant 0.000000e+00 : f32
    %10 = vector.broadcast %cst_7 : f32 to vector<256x512xf32>
    %11 = arith.maximumf %9, %10 : vector<256x512xf32>
    %c0_8 = arith.constant 0 : index
    %c0_9 = arith.constant 0 : index
    %12 = vector.load %arg7[%c0_8, %c0_9] : memref<8x512xf32, #tpu.memory_space<vmem>>, vector<8x512xf32>
    %13 = vector.shape_cast %11 : vector<256x512xf32> to vector<32x8x512xf32>
    %cst_10 = arith.constant dense<0.000000e+00> : vector<8x512xf32>
    %14 = vector.multi_reduction <add>, %13, %cst_10 [0] : vector<32x8x512xf32> to vector<8x512xf32>
    %15 = arith.addf %12, %14 : vector<8x512xf32>
    %c0_11 = arith.constant 0 : index
    %c0_12 = arith.constant 0 : index
    %16 = vector.load %arg7[%c0_11, %c0_12] : memref<8x512xf32, #tpu.memory_space<vmem>>, vector<8x512xf32>
    tpu.vector_store %arg7[%c0_11, %c0_12], %15 {strides = array<i32>} : memref<8x512xf32, #tpu.memory_space<vmem>>, vector<8x512xf32>,
    %c0_i32_13 = arith.constant 0 : i32
    %17 = arith.cmpi eq, %arg2, %c0_i32_13 : i32
    %18 = arith.extui %17 : i1 to i32
    %c0_i32_14 = arith.constant 0 : i32
    %19 = arith.cmpi ne, %18, %c0_i32_14 : i32
    scf.if %19 {
      %c0_15 = arith.constant 0 : index
      %c0_16 = arith.constant 0 : index
      %20 = vector.load %arg7[%c0_15, %c0_16] : memref<8x512xf32, #tpu.memory_space<vmem>>, vector<8x512xf32>
      %cst_17 = arith.constant dense<0.000000e+00> : vector<512xf32>
      %21 = vector.multi_reduction <add>, %20, %cst_17 [0] : vector<8x512xf32> to vector<512xf32>
      %22 = vector.shape_cast %21 : vector<512xf32> to vector<1x512xf32>
      %cst_18 = arith.constant 3.906250e-03 : f32
      %23 = vector.broadcast %cst_18 : f32 to vector<1x512xf32>
      %24 = arith.mulf %22, %23 : vector<1x512xf32>
      %c0_19 = arith.constant 0 : index
      %c0_20 = arith.constant 0 : index
      %c0_21 = arith.constant 0 : index
      %25 = vector.load %arg6[%c0_19, %c0_20, %c0_21] : memref<1x1x512xf32, #tpu.memory_space<vmem>>, vector<1x1x512xf32>
      %26 = vector.shape_cast %25 : vector<1x1x512xf32> to vector<1x512xf32>
      %27 = vector.shape_cast %24 : vector<1x512xf32> to vector<1x1x512xf32>
      tpu.vector_store %arg6[%c0_19, %c0_20, %c0_21], %27 {strides = array<i32>} : memref<1x1x512xf32, #tpu.memory_space<vmem>>, vector<1x1x512xf32>,
    } else {
    }
    return
  }
  func.func @transform_0(%arg0: i32, %arg1: i32, %arg2: i32) -> (i32, i32, i32) {
    %c0_i32 = arith.constant 0 : i32
    %c0_i32_0 = arith.constant 0 : i32
    return %arg0, %arg2, %c0_i32 : i32, i32, i32
  }
  func.func @transform_1(%arg0: i32, %arg1: i32, %arg2: i32) -> (i32, i32) {
    %c0_i32 = arith.constant 0 : i32
    %c0_i32_0 = arith.constant 0 : i32
    return %c0_i32, %arg1 : i32, i32
  }
  func.func @transform_2(%arg0: i32, %arg1: i32, %arg2: i32) -> (i32, i32) {
    %c0_i32 = arith.constant 0 : i32
    %c0_i32_0 = arith.constant 0 : i32
    return %c0_i32, %arg1 : i32, i32
  }
  func.func @transform_3(%arg0: i32, %arg1: i32, %arg2: i32) -> (i32, i32, i32) {
    %c0_i32 = arith.constant 0 : i32
    %c0_i32_0 = arith.constant 0 : i32
    return %arg0, %c0_i32, %arg1 : i32, i32, i32
  }
}

</mosaic_0001>

<llo_original>
// kernel: tpu_custom_call.1
$region0: #{tpu_custom_call.1}
  #allocation0 [shape = 'u32[]', space=smem, size = 0x4, offset = 0x4, fixed_abs, tag = 'smem constant byte address 0x4 - core index']
  #allocation1 [shape = 'u32[144,128]{1,0:T(1,128)}', space=vmem, size = 0x12000, scoped, tag = 'internal scratch']
  #allocation2 [shape = 'f32[8,512]{1,0:T(8,128)}', space=vmem, size = 0x4000, scoped, tag = 'scratch operand']
  %s0 = inlined_call_operand.vmem [shape: bf16[2,256,32], index: 0, kind: input, shape index: {}]
  %s1 = inlined_call_operand.vmem [shape: bf16[32,2048], index: 1, kind: input, shape index: {}]
  %s2 = inlined_call_operand.vmem [shape: f32[1,2048], index: 2, kind: input, shape index: {}]
  %s3 = inlined_call_operand.hbm [shape: f32[2,1,2048], index: 3, kind: output, shape index: {}]
  %s4 = sld [smem:[#allocation0]]
  $region76: #{tpu_custom_call.1} parent=0
    _
  %s6 = ssub.s32 1, %s4
  %s7 = scalar_select 0, %s6, %s4
  $region1: #{tpu_custom_call.1} parent=0
    #allocation3 [shape = 'u8[65536]{0}', space=vmem, size = 0x10000, scoped, tag = 'input window, operand 1']
    #allocation4 [shape = 'u8[4096]{0}', space=vmem, size = 0x1000, scoped, tag = 'output window, operand 0']
    #allocation5 [shape = 's32[2]{0}', space=sflag, size = 0x8, scoped, tag = 'scoped memory for tpu_custom_call.1']
    %8 = vsyncpa [#allocation5], 0
    %s9 = scalar_lea.sflag [#allocation5], 1
    %10 = vsyncpa %s9, 0
    loop: start=0, step=1, limit=10
    $region2: #{tpu_custom_call.1} parent=1 // loop_pre_header
      _
    $region3: #{tpu_custom_call.1} parent=1 // loop_header
      %s12 = sphi 0, %s16
      %p13 = scmp.ge.s32.totalorder %s12, 10
      %s19 = sphi 0, %s38
      %s20 = sphi 0, %s34
      %s21 = sphi 0, %s30
      %s22 = sphi 0, %s19
      %s23 = sphi 0, %s20
      %s24 = sphi 0, %s21
      %s25 = sphi 0, %s22
      %s26 = sphi 0, %s23
      %s27 = sphi 0, %s24
      %s43 = sphi 0, %s45
      %s46 = sphi 0, %s43
      %s47 = sphi 0, %s46
      %s63 = sphi 0, %s47
      %s69 = sphi 0, %s71
      %s72 = sphi 0, %s69
      %s73 = sphi 0, %s72
      %s89 = sphi 0, %s73
      %s95 = sphi 0, %s97
      %s98 = sphi 0, %s95
      %s99 = sphi 0, %s98
      %s115 = sphi 0, %s99
      %s123 = sphi 0, %s125
      %s126 = sphi 0, %s123
      %s127 = sphi 0, %s126
      %s143 = sphi 0, %s127
    $region4: #{tpu_custom_call.1} parent=1 // loop_header_branch
      %15 = sbr.rel (%p13) target = $region8
    $region5: #{tpu_custom_call.1} parent=1 // loop_body
      %s17 = ssub.s32 %s12, 1
      %s18 = ssub.s32 %s12, 2
      %s28 = sadd.s32 1, %s21
      %p29 = scmp.ge.s32.totalorder %s28, 1
      %s30 = scalar_select %p29, 0, %s28
      %s31 = sadd.s32 1, %s20
      %s32 = scalar_select %p29, %s31, %s20
      %p33 = scmp.ge.s32.totalorder %s32, 4
      %s34 = scalar_select %p33, 0, %s32
      %s35 = sadd.s32 1, %s19
      %s36 = scalar_select %p33, %s35, %s19
      %p37 = scmp.ge.s32.totalorder %s36, 2
      %s38 = scalar_select %p37, 0, %s36
      %s39 = ssub.s32 %s19, %s38
      %s40 = ssub.s32 %s21, %s30
      %s41 = sor.u32 %s39, %s40
      %p42 = scmp.eq.s32.totalorder %s41, 0
      %s44 = sadd.s32 %s43, 1
      %s45 = scalar_select %p42, %s43, %s44
      %p48 = pneg %p42
      %p49 = scmp.eq.s32.totalorder %s12, 7
      %p50 = por %p48, %p49
      %p51 = scmp.ne.s32.totalorder %s43, %s46
      %p52 = scmp.eq.s32.totalorder %s12, 0
      %p53 = por %p51, %p52
      %p54 = scmp.ne.s32.totalorder %s43, %s46
      %p55 = scmp.eq.s32.totalorder %s17, 7
      %p56 = por %p54, %p55
      %p57 = scmp.ne.s32.totalorder %s46, %s47
      %p58 = scmp.eq.s32.totalorder %s17, 0
      %p59 = por %p57, %p58
      %p60 = scmp.ne.s32.totalorder %s46, %s47
      %p61 = scmp.eq.s32.totalorder %s18, 7
      %p62 = por %p60, %p61
      %p64 = scmp.ne.s32.totalorder %s47, %s63
      %p65 = scmp.eq.s32.totalorder %s18, 0
      %p66 = por %p64, %p65
      %s67 = ssub.s32 %s20, %s34
      %p68 = scmp.eq.s32.totalorder %s67, 0
      %s70 = sadd.s32 %s69, 1
      %s71 = scalar_select %p68, %s69, %s70
      %p74 = pneg %p68
      %p75 = scmp.eq.s32.totalorder %s12, 7
      %p76 = por %p74, %p75
      %p77 = scmp.ne.s32.totalorder %s69, %s72
      %p78 = scmp.eq.s32.totalorder %s12, 0
      %p79 = por %p77, %p78
      %p80 = scmp.ne.s32.totalorder %s69, %s72
      %p81 = scmp.eq.s32.totalorder %s17, 7
      %p82 = por %p80, %p81
      %p83 = scmp.ne.s32.totalorder %s72, %s73
      %p84 = scmp.eq.s32.totalorder %s17, 0
      %p85 = por %p83, %p84
      %p86 = scmp.ne.s32.totalorder %s72, %s73
      %p87 = scmp.eq.s32.totalorder %s18, 7
      %p88 = por %p86, %p87
      %p90 = scmp.ne.s32.totalorder %s73, %s89
      %p91 = scmp.eq.s32.totalorder %s18, 0
      %p92 = por %p90, %p91
      %s93 = ssub.s32 %s20, %s34
      %p94 = scmp.eq.s32.totalorder %s93, 0
      %s96 = sadd.s32 %s95, 1
      %s97 = scalar_select %p94, %s95, %s96
      %p100 = pneg %p94
      %p101 = scmp.eq.s32.totalorder %s12, 7
      %p102 = por %p100, %p101
      %p103 = scmp.ne.s32.totalorder %s95, %s98
      %p104 = scmp.eq.s32.totalorder %s12, 0
      %p105 = por %p103, %p104
      %p106 = scmp.ne.s32.totalorder %s95, %s98
      %p107 = scmp.eq.s32.totalorder %s17, 7
      %p108 = por %p106, %p107
      %p109 = scmp.ne.s32.totalorder %s98, %s99
      %p110 = scmp.eq.s32.totalorder %s17, 0
      %p111 = por %p109, %p110
      %p112 = scmp.ne.s32.totalorder %s98, %s99
      %p113 = scmp.eq.s32.totalorder %s18, 7
      %p114 = por %p112, %p113
      %p116 = scmp.ne.s32.totalorder %s99, %s115
      %p117 = scmp.eq.s32.totalorder %s18, 0
      %p118 = por %p116, %p117
      %s119 = ssub.s32 %s19, %s38
      %s120 = ssub.s32 %s20, %s34
      %s121 = sor.u32 %s119, %s120
      %p122 = scmp.eq.s32.totalorder %s121, 0
      %s124 = sadd.s32 %s123, 1
      %s125 = scalar_select %p122, %s123, %s124
      %p128 = pneg %p122
      %p129 = scmp.eq.s32.totalorder %s12, 7
      %p130 = por %p128, %p129
      %p131 = scmp.ne.s32.totalorder %s123, %s126
      %p132 = scmp.eq.s32.totalorder %s12, 0
      %p133 = por %p131, %p132
      %p134 = scmp.ne.s32.totalorder %s123, %s126
      %p135 = scmp.eq.s32.totalorder %s17, 7
      %p136 = por %p134, %p135
      %p137 = scmp.ne.s32.totalorder %s126, %s127
      %p138 = scmp.eq.s32.totalorder %s17, 0
      %p139 = por %p137, %p138
      %p140 = scmp.ne.s32.totalorder %s126, %s127
      %p141 = scmp.eq.s32.totalorder %s18, 7
      %p142 = por %p140, %p141
      %p144 = scmp.ne.s32.totalorder %s127, %s143
      %p145 = scmp.eq.s32.totalorder %s18, 0
      %p146 = por %p144, %p145
      %p147 = scmp.le.s32.totalorder 1, %s12
      %p148 = scmp.lt.s32.totalorder %s12, 9
      %p149 = pnand %p147, %p148
      %p150 = pneg %p149
      // Predicated region
      $region9: #{tpu_custom_call.1} parent=5 // pred_check
        _
      $region10: #{tpu_custom_call.1} parent=5 // pred_check_branch
        %152 = sbr.rel (%p149) target = $region12
      $region11: #{tpu_custom_call.1} parent=5 // pred_region
        %s153 = ssub.s32 %s12, 1
      $region12: #{tpu_custom_call.1} parent=5 // pred_fallthru
        _
      %p154 = scmp.lt.s32.totalorder %s12, 8
      // Predicated region
      $region13: #{tpu_custom_call.1} parent=5 // pred_check
        %p155 = pneg %p154
      $region14: #{tpu_custom_call.1} parent=5 // pred_check_branch
        %157 = sbr.rel (%p155) target = $region16
      $region15: #{tpu_custom_call.1} parent=5 // pred_region
        // Predicated region
        $region17: #{tpu_custom_call.1} parent=15 // pred_check
          %p158 = pneg %p53
        $region18: #{tpu_custom_call.1} parent=15 // pred_check_branch
          %160 = sbr.rel (%p158) target = $region20
        $region19: #{tpu_custom_call.1} parent=15 // pred_region
          %s161 = smul.u32 32, %s21
          %p162 = scmp.lt.s32.totalorder %s19, 1
          %s163 = scalar_select %p162, %s19, 1
          %p164 = scmp.lt.s32.totalorder %s161, 31
          %s165 = scalar_select %p164, %s161, 31
          %s166 = smul.addr %s163, 32
          %s167 = sadd.s32 %s165, %s166
          %s168 = smul.addr %s167, 4
          %s169 = scalar_lea.vmem %s0, %s168
          %s170 = smul.u32 32, %s21
        $region20: #{tpu_custom_call.1} parent=15 // pred_fallthru
          _
        // Predicated region
        $region21: #{tpu_custom_call.1} parent=15 // pred_check
          %p171 = pneg %p79
        $region22: #{tpu_custom_call.1} parent=15 // pred_check_branch
          %173 = sbr.rel (%p171) target = $region24
        $region23: #{tpu_custom_call.1} parent=15 // pred_region
          %s174 = sand.u32 %s69, 1
          %s175 = sand.u32 %s69, 1
          %s176 = smul.addr %s175, 64
          %s177 = scalar_lea.vmem [#allocation3], %s176
          %s178 = smul.u32 4, %s20
          %s179 = smul.addr %s178, 4
          %s180 = scalar_lea.vmem %s1, %s179
          // Predicated region
          $region25: #{tpu_custom_call.1} parent=23 // pred_check
            _
          $region26: #{tpu_custom_call.1} parent=23 // pred_check_branch
            %182 = sbr.rel (0) target = $region28
          $region27: #{tpu_custom_call.1} parent=23 // pred_region
            // Predicated region
            $region29: #{tpu_custom_call.1} parent=27 // pred_check
              _
            $region30: #{tpu_custom_call.1} parent=27 // pred_check_branch
              %184 = sbr.rel (0) target = $region32
            $region31: #{tpu_custom_call.1} parent=27 // pred_region
              loop: start=0, step=1, limit=1
              $region33: #{tpu_custom_call.1} parent=31 // loop_pre_header
                _
              $region34: #{tpu_custom_call.1} parent=31 // loop_header
                %s186 = sphi 0, %s190
                %p187 = scmp.ge.s32.totalorder %s186, 1
                %s191 = sphi %s180, %s180
                %s192 = sphi %s177, %s177
              $region35: #{tpu_custom_call.1} parent=31 // loop_header_branch
                %189 = sbr.rel (%p187) target = $region39
              $region36: #{tpu_custom_call.1} parent=31 // loop_body
                %v193 = vld [vmem:[%s191] sm:$0xff]
                %194 = vst [vmem:[%s192] sm:$0xff] %v193
                %v195 = vld [vmem:[%s191 + $0x8] sm:$0xff]
                %196 = vst [vmem:[%s192 + $0x8] sm:$0xff] %v195
                %v197 = vld [vmem:[%s191 + $0x40] sm:$0xff]
                %198 = vst [vmem:[%s192 + $0x10] sm:$0xff] %v197
                %v199 = vld [vmem:[%s191 + $0x48] sm:$0xff]
                %200 = vst [vmem:[%s192 + $0x18] sm:$0xff] %v199
                %v201 = vld [vmem:[%s191 + $0x80] sm:$0xff]
                %202 = vst [vmem:[%s192 + $0x20] sm:$0xff] %v201
                %v203 = vld [vmem:[%s191 + $0x88] sm:$0xff]
                %204 = vst [vmem:[%s192 + $0x28] sm:$0xff] %v203
                %v205 = vld [vmem:[%s191 + $0xc0] sm:$0xff]
                %206 = vst [vmem:[%s192 + $0x30] sm:$0xff] %v205
                %v207 = vld [vmem:[%s191 + $0xc8] sm:$0xff]
                %208 = vst [vmem:[%s192 + $0x38] sm:$0xff] %v207
              $region37: #{tpu_custom_call.1} parent=31 // loop_footer
                %s190 = sadd.s32 1, %s186
              $region38: #{tpu_custom_call.1} parent=31 // loop_footer_branch
                %185 = sbr.rel target = $region34
              $region39: #{tpu_custom_call.1} parent=31 // loop_exit
                _
            $region32: #{tpu_custom_call.1} parent=27 // pred_fallthru
              _
            // Predicated region
            $region40: #{tpu_custom_call.1} parent=27 // pred_check
              _
            $region41: #{tpu_custom_call.1} parent=27 // pred_check_branch
              %210 = sbr.rel target = $region43
            $region42: #{tpu_custom_call.1} parent=27 // pred_region
              _
            $region43: #{tpu_custom_call.1} parent=27 // pred_fallthru
              _
          $region28: #{tpu_custom_call.1} parent=23 // pred_fallthru
            _
          %211 = vnop
        $region24: #{tpu_custom_call.1} parent=15 // pred_fallthru
          _
        // Predicated region
        $region44: #{tpu_custom_call.1} parent=15 // pred_check
          %p212 = pneg %p105
        $region45: #{tpu_custom_call.1} parent=15 // pred_check_branch
          %214 = sbr.rel (%p212) target = $region47
        $region46: #{tpu_custom_call.1} parent=15 // pred_region
          %s215 = smul.u32 4, %s20
          %p216 = scmp.lt.s32.totalorder %s215, 15
          %s217 = scalar_select %p216, %s215, 15
          %s218 = scalar_lea.vmem %s2, %s217
          %s219 = smul.u32 4, %s20
        $region47: #{tpu_custom_call.1} parent=15 // pred_fallthru
          _
      $region16: #{tpu_custom_call.1} parent=5 // pred_fallthru
        _
      %p220 = scmp.le.s32.totalorder 1, %s12
      %p221 = scmp.lt.s32.totalorder %s12, 9
      %p222 = pnand %p220, %p221
      %p223 = pneg %p222
      // Predicated region
      $region48: #{tpu_custom_call.1} parent=5 // pred_check
        _
      $region49: #{tpu_custom_call.1} parent=5 // pred_check_branch
        %225 = sbr.rel (%p222) target = $region51
      $region50: #{tpu_custom_call.1} parent=5 // pred_region
        %s226 = ssub.s32 %s12, 1
        %s227 = sand.u32 %s72, 1
        %s228 = sand.u32 %s72, 1
        %s229 = smul.addr %s228, 64
        %s230 = scalar_lea.vmem [#allocation3], %s229
        // Predicated region
        $region52: #{tpu_custom_call.1} parent=50 // pred_check
          %p231 = pneg %p85
        $region53: #{tpu_custom_call.1} parent=50 // pred_check_branch
          %233 = sbr.rel (%p231) target = $region55
        $region54: #{tpu_custom_call.1} parent=50 // pred_region
          _
        $region55: #{tpu_custom_call.1} parent=50 // pred_fallthru
          _
        %s234 = smul.u32 32, %s24
        %p235 = scmp.lt.s32.totalorder %s22, 1
        %s236 = scalar_select %p235, %s22, 1
        %p237 = scmp.lt.s32.totalorder %s234, 31
        %s238 = scalar_select %p237, %s234, 31
        %s239 = smul.addr %s236, 32
        %s240 = sadd.s32 %s238, %s239
        %s241 = smul.addr %s240, 4
        %s242 = scalar_lea.vmem %s0, %s241
        %p243 = pneg %p59
        %p244 = pneg %p56
        %s245 = sand.u32 %s72, 1
        %s246 = sand.u32 %s72, 1
        %s247 = smul.addr %s246, 64
        %s248 = scalar_lea.vmem [#allocation3], %s247
        %p249 = pneg %p85
        %p250 = pneg %p82
        %s251 = smul.u32 4, %s23
        %p252 = scmp.lt.s32.totalorder %s251, 15
        %s253 = scalar_select %p252, %s251, 15
        %s254 = scalar_lea.vmem %s2, %s253
        %p255 = pneg %p111
        %p256 = pneg %p108
        %p257 = pneg %p139
        %p258 = pneg %p136
        %s259 = sand.u32 %s126, 1
        %s260 = scalar_lea.sflag [#allocation5], %s259
        %s261 = sand.u32 %s126, 1
        %s262 = smul.addr %s261, 4
        %s263 = scalar_lea.vmem [#allocation4], %s262
        %s264 = smul.u32 32, %s24
        %p265 = scmp.lt.s32.totalorder %s22, 1
        %s266 = scalar_select %p265, %s22, 1
        %p267 = scmp.lt.s32.totalorder %s264, 31
        %s268 = scalar_select %p267, %s264, 31
        %s269 = smul.addr %s266, 32
        %s270 = sadd.s32 %s268, %s269
        %s271 = smul.addr %s270, 4
        %s272 = scalar_lea.vmem %s0, %s271
        %s273 = smul.u32 32, %s24
        %s274 = smul.u32 4, %s23
        %s275 = smul.u32 4, %s23
        %p276 = scmp.lt.s32.totalorder %s275, 15
        %s277 = scalar_select %p276, %s275, 15
        %s278 = scalar_lea.vmem %s2, %s277
        %s279 = smul.u32 4, %s23
        %s280 = smul.u32 4, %s23
        %p282 = scmp.eq.s32.totalorder %s24, 0
        // Predicated region
        $region56: #{tpu_custom_call.1} parent=50 // pred_check
          %p283 = pneg %p282
        $region57: #{tpu_custom_call.1} parent=50 // pred_check_branch
          %285 = sbr.rel (%p283) target = $region59
        $region58: #{tpu_custom_call.1} parent=50 // pred_region
          %286 = vst [vmem:[#allocation2] sm:$0xff] 0.0
          %287 = vst [vmem:[#allocation2 + $0x8] sm:$0xff] 0.0
          %288 = vst [vmem:[#allocation2 + $0x10] sm:$0xff] 0.0
          %289 = vst [vmem:[#allocation2 + $0x18] sm:$0xff] 0.0
        $region59: #{tpu_custom_call.1} parent=50 // pred_fallthru
          _
        %v290 = vld [vmem:[%s272] sm:$0xf]
        %v291 = vld [vmem:[%s272 + $0x4] sm:$0xf]
        %v292 = vld [vmem:[%s272 + $0x8] sm:$0xf]
        %v293 = vld [vmem:[%s272 + $0xc] sm:$0xf]
        %v294 = vld [vmem:[%s272 + $0x10] sm:$0xf]
        %v295 = vld [vmem:[%s272 + $0x14] sm:$0xf]
        %v296 = vld [vmem:[%s272 + $0x18] sm:$0xf]
        %v297 = vld [vmem:[%s272 + $0x1c] sm:$0xf]
        %v298 = vld [vmem:[%s272 + $0x20] sm:$0xf]
        %v299 = vld [vmem:[%s272 + $0x24] sm:$0xf]
        %v300 = vld [vmem:[%s272 + $0x28] sm:$0xf]
        %v301 = vld [vmem:[%s272 + $0x2c] sm:$0xf]
        %v302 = vld [vmem:[%s272 + $0x30] sm:$0xf]
        %v303 = vld [vmem:[%s272 + $0x34] sm:$0xf]
        %v304 = vld [vmem:[%s272 + $0x38] sm:$0xf]
        %v305 = vld [vmem:[%s272 + $0x3c] sm:$0xf]
        %v306 = vld [vmem:[%s272 + $0x40] sm:$0xf]
        %v307 = vld [vmem:[%s272 + $0x44] sm:$0xf]
        %v308 = vld [vmem:[%s272 + $0x48] sm:$0xf]
        %v309 = vld [vmem:[%s272 + $0x4c] sm:$0xf]
        %v310 = vld [vmem:[%s272 + $0x50] sm:$0xf]
        %v311 = vld [vmem:[%s272 + $0x54] sm:$0xf]
        %v312 = vld [vmem:[%s272 + $0x58] sm:$0xf]
        %v313 = vld [vmem:[%s272 + $0x5c] sm:$0xf]
        %v314 = vld [vmem:[%s272 + $0x60] sm:$0xf]
        %v315 = vld [vmem:[%s272 + $0x64] sm:$0xf]
        %v316 = vld [vmem:[%s272 + $0x68] sm:$0xf]
        %v317 = vld [vmem:[%s272 + $0x6c] sm:$0xf]
        %v318 = vld [vmem:[%s272 + $0x70] sm:$0xf]
        %v319 = vld [vmem:[%s272 + $0x74] sm:$0xf]
        %v320 = vld [vmem:[%s272 + $0x78] sm:$0xf]
        %v321 = vld [vmem:[%s272 + $0x7c] sm:$0xf]
        %v322 = vld [vmem:[%s230] sm:$0xff]
        %v323 = vld [vmem:[%s230 + $0x8] sm:$0xff]
        %v324 = vld [vmem:[%s230 + $0x10] sm:$0xff]
        %v325 = vld [vmem:[%s230 + $0x18] sm:$0xff]
        %v326 = vld [vmem:[%s230 + $0x20] sm:$0xff]
        %v327 = vld [vmem:[%s230 + $0x28] sm:$0xff]
        %v328 = vld [vmem:[%s230 + $0x30] sm:$0xff]
        %v329 = vld [vmem:[%s230 + $0x38] sm:$0xff]
        %v330 = vld [vmem:[%s278] sm:$0xf]
        %v332 = vlaneseq
        %v333 = vshrl.u32 %v332, 7
        %v334 = vsub.s32 0, %v333
        %v335 = vrot.slane %v330, %v334
        %v336 = vlaneseq
        %v337 = vshrl.u32 %v336, 7
        %v338 = vsub.s32 1, %v337
        %v339 = vrot.slane %v330, %v338
        %v340 = vlaneseq
        %v341 = vshrl.u32 %v340, 7
        %v342 = vsub.s32 2, %v341
        %v343 = vrot.slane %v330, %v342
        %v344 = vlaneseq
        %v345 = vshrl.u32 %v344, 7
        %v346 = vsub.s32 3, %v345
        %v347 = vrot.slane %v330, %v346
        %v384 = vunpack.c.l.b16 %v290
        %v385 = vunpack.c.l.b16 %v291
        %v386 = vunpack.c.l.b16 %v292
        %v387 = vunpack.c.l.b16 %v293
        %v388 = vunpack.c.l.b16 %v294
        %v389 = vunpack.c.l.b16 %v295
        %v390 = vunpack.c.l.b16 %v296
        %v391 = vunpack.c.l.b16 %v297
        %v392 = vunpack.c.l.b16 %v298
        %v393 = vunpack.c.l.b16 %v299
        %v394 = vunpack.c.l.b16 %v300
        %v395 = vunpack.c.l.b16 %v301
        %v396 = vunpack.c.l.b16 %v302
        %v397 = vunpack.c.l.b16 %v303
        %v398 = vunpack.c.l.b16 %v304
        %v399 = vunpack.c.l.b16 %v305
        %v400 = vunpack.c.l.b16 %v306
        %v401 = vunpack.c.l.b16 %v307
        %v402 = vunpack.c.l.b16 %v308
        %v403 = vunpack.c.l.b16 %v309
        %v404 = vunpack.c.l.b16 %v310
        %v405 = vunpack.c.l.b16 %v311
        %v406 = vunpack.c.l.b16 %v312
        %v407 = vunpack.c.l.b16 %v313
        %v408 = vunpack.c.l.b16 %v314
        %v409 = vunpack.c.l.b16 %v315
        %v410 = vunpack.c.l.b16 %v316
        %v411 = vunpack.c.l.b16 %v317
        %v412 = vunpack.c.l.b16 %v318
        %v413 = vunpack.c.l.b16 %v319
        %v414 = vunpack.c.l.b16 %v320
        %v415 = vunpack.c.l.b16 %v321
        %v416 = vpack.c.b16 %v385, %v384
        %v417 = vpack.c.b16 %v387, %v386
        %v418 = vpack.c.b16 %v389, %v388
        %v419 = vpack.c.b16 %v391, %v390
        %v420 = vpack.c.b16 %v393, %v392
        %v421 = vpack.c.b16 %v395, %v394
        %v422 = vpack.c.b16 %v397, %v396
        %v423 = vpack.c.b16 %v399, %v398
        %v424 = vpack.c.b16 %v401, %v400
        %v425 = vpack.c.b16 %v403, %v402
        %v426 = vpack.c.b16 %v405, %v404
        %v427 = vpack.c.b16 %v407, %v406
        %v428 = vpack.c.b16 %v409, %v408
        %v429 = vpack.c.b16 %v411, %v410
        %v430 = vpack.c.b16 %v413, %v412
        %v431 = vpack.c.b16 %v415, %v414
        %v440 = vunpack.c.l.b16 %v322
        %v441 = vunpack.c.h.b16 %v322
        %v442 = vunpack.c.l.b16 %v323
        %v443 = vunpack.c.h.b16 %v323
        %v444 = vunpack.c.l.b16 %v324
        %v445 = vunpack.c.h.b16 %v324
        %v446 = vunpack.c.l.b16 %v325
        %v447 = vunpack.c.h.b16 %v325
        %v448 = vunpack.c.l.b16 %v326
        %v449 = vunpack.c.h.b16 %v326
        %v450 = vunpack.c.l.b16 %v327
        %v451 = vunpack.c.h.b16 %v327
        %v452 = vunpack.c.l.b16 %v328
        %v453 = vunpack.c.h.b16 %v328
        %v454 = vunpack.c.l.b16 %v329
        %v455 = vunpack.c.h.b16 %v329
        %v456 = vpack.c.b16 %v444, %v440
        %v457 = vpack.c.b16 %v445, %v441
        %v458 = vpack.c.b16 %v446, %v442
        %v459 = vpack.c.b16 %v447, %v443
        %v460 = vpack.c.b16 %v452, %v448
        %v461 = vpack.c.b16 %v453, %v449
        %v462 = vpack.c.b16 %v454, %v450
        %v463 = vpack.c.b16 %v455, %v451
        %vm472 = vcmask 261120
        %v474 = vsel %vm472, %v416, 0
        %v477 = vsel %vm472, %v417, 0
        %v480 = vsel %vm472, %v418, 0
        %v483 = vsel %vm472, %v419, 0
        %v486 = vsel %vm472, %v420, 0
        %v489 = vsel %vm472, %v421, 0
        %v492 = vsel %vm472, %v422, 0
        %v495 = vsel %vm472, %v423, 0
        %v498 = vsel %vm472, %v424, 0
        %v501 = vsel %vm472, %v425, 0
        %v504 = vsel %vm472, %v426, 0
        %v507 = vsel %vm472, %v427, 0
        %v510 = vsel %vm472, %v428, 0
        %v513 = vsel %vm472, %v429, 0
        %v516 = vsel %vm472, %v430, 0
        %v519 = vsel %vm472, %v431, 0
        %521 = vmatprep.subr.bf16.mxu0 %v457
        %522 = vmatpush1.bf16.msra.mxu0 %v456
        %523 = vmatprep.subr.bf16.mxu0 %v461
        %524 = vmatpush1.bf16.msra.mxu0 %v460
        %525 = vmatprep.subr.bf16.mxu0 0
        %526 = vmatpush1.bf16.msra.mxu0 0
        %527 = vmatprep.subr.bf16.mxu0 0
        %528 = vmatpush1.bf16.msra.mxu0 0
        %529 = vmatprep.subr.bf16.mxu0 0
        %530 = vmatpush1.bf16.msra.mxu0 0
        %531 = vmatprep.subr.bf16.mxu0 0
        %532 = vmatpush1.bf16.msra.mxu0 0
        %533 = vmatprep.subr.bf16.mxu0 0
        %534 = vmatpush1.bf16.msra.mxu0 0
        %535 = vmatprep.subr.bf16.mxu0 0
        %536 = vmatpush1.bf16.msra.mxu0 0
        %537 = vmatprep.subr.bf16.mxu0 0
        %538 = vmatpush1.bf16.msra.mxu0 0
        %539 = vmatprep.subr.bf16.mxu0 0
        %540 = vmatpush1.bf16.msra.mxu0 0
        %541 = vmatprep.subr.bf16.mxu0 0
        %542 = vmatpush1.bf16.msra.mxu0 0
        %543 = vmatprep.subr.bf16.mxu0 0
        %544 = vmatpush1.bf16.msra.mxu0 0
        %545 = vmatprep.subr.bf16.mxu0 0
        %546 = vmatpush1.bf16.msra.mxu0 0
        %547 = vmatprep.subr.bf16.mxu0 0
        %548 = vmatpush1.bf16.msra.mxu0 0
        %549 = vmatprep.subr.bf16.mxu0 0
        %550 = vmatpush1.bf16.msra.mxu0 0
        %551 = vmatprep.subr.bf16.mxu0 0
        %552 = vmatpush1.bf16.msra.mxu0 0
        %553 = vmatprep.mubr.bf16.mxu0 0
        %554 = vmatmul.mubr.bf16.gmra.mrb[0].mxu0 %v474
        %v555 = vpop.f32.mrb[0].mxu0
        %v556 = vadd.f32 %v335, %v555
        %v557 = vpop.f32.mrb[0].mxu0
        %v558 = vadd.f32 %v339, %v557
        %v559 = vpop.f32.mrb[0].mxu0
        %v560 = vadd.f32 %v335, %v559
        %v561 = vpop.f32.mrb[0].mxu0
        %v562 = vadd.f32 %v339, %v561
        %563 = vmatprep.mubr.bf16.mxu0 0
        %564 = vmatmul.mubr.bf16.gmra.mrb[0].mxu0 %v477
        %v565 = vpop.f32.mrb[0].mxu0
        %v566 = vadd.f32 %v335, %v565
        %v567 = vpop.f32.mrb[0].mxu0
        %v568 = vadd.f32 %v339, %v567
        %v569 = vpop.f32.mrb[0].mxu0
        %v570 = vadd.f32 %v335, %v569
        %v571 = vpop.f32.mrb[0].mxu0
        %v572 = vadd.f32 %v339, %v571
        %573 = vmatprep.mubr.bf16.mxu0 0
        %574 = vmatmul.mubr.bf16.gmra.mrb[0].mxu0 %v480
        %v575 = vpop.f32.mrb[0].mxu0
        %v576 = vadd.f32 %v335, %v575
        %v577 = vpop.f32.mrb[0].mxu0
        %v578 = vadd.f32 %v339, %v577
        %v579 = vpop.f32.mrb[0].mxu0
        %v580 = vadd.f32 %v335, %v579
        %v581 = vpop.f32.mrb[0].mxu0
        %v582 = vadd.f32 %v339, %v581
        %583 = vmatprep.mubr.bf16.mxu0 0
        %584 = vmatmul.mubr.bf16.gmra.mrb[0].mxu0 %v483
        %v585 = vpop.f32.mrb[0].mxu0
        %v586 = vadd.f32 %v335, %v585
        %v587 = vpop.f32.mrb[0].mxu0
        %v588 = vadd.f32 %v339, %v587
        %v589 = vpop.f32.mrb[0].mxu0
        %v590 = vadd.f32 %v335, %v589
        %v591 = vpop.f32.mrb[0].mxu0
        %v592 = vadd.f32 %v339, %v591
        %593 = vmatprep.mubr.bf16.mxu0 0
        %594 = vmatmul.mubr.bf16.gmra.mrb[0].mxu0 %v486
        %v595 = vpop.f32.mrb[0].mxu0
        %v596 = vadd.f32 %v335, %v595
        %v597 = vpop.f32.mrb[0].mxu0
        %v598 = vadd.f32 %v339, %v597
        %v599 = vpop.f32.mrb[0].mxu0
        %v600 = vadd.f32 %v335, %v599
        %v601 = vpop.f32.mrb[0].mxu0
        %v602 = vadd.f32 %v339, %v601
        %603 = vmatprep.mubr.bf16.mxu0 0
        %604 = vmatmul.mubr.bf16.gmra.mrb[0].mxu0 %v489
        %v605 = vpop.f32.mrb[0].mxu0
        %v606 = vadd.f32 %v335, %v605
        %v607 = vpop.f32.mrb[0].mxu0
        %v608 = vadd.f32 %v339, %v607
        %v609 = vpop.f32.mrb[0].mxu0
        %v610 = vadd.f32 %v335, %v609
        %v611 = vpop.f32.mrb[0].mxu0
        %v612 = vadd.f32 %v339, %v611
        %613 = vmatprep.mubr.bf16.mxu0 0
        %614 = vmatmul.mubr.bf16.gmra.mrb[0].mxu0 %v492
        %v615 = vpop.f32.mrb[0].mxu0
        %v616 = vadd.f32 %v335, %v615
        %v617 = vpop.f32.mrb[0].mxu0
        %v618 = vadd.f32 %v339, %v617
        %v619 = vpop.f32.mrb[0].mxu0
        %v620 = vadd.f32 %v335, %v619
        %v621 = vpop.f32.mrb[0].mxu0
        %v622 = vadd.f32 %v339, %v621
        %623 = vmatprep.mubr.bf16.mxu0 0
        %624 = vmatmul.mubr.bf16.gmra.mrb[0].mxu0 %v495
        %v625 = vpop.f32.mrb[0].mxu0
        %v626 = vadd.f32 %v335, %v625
        %v627 = vpop.f32.mrb[0].mxu0
        %v628 = vadd.f32 %v339, %v627
        %v629 = vpop.f32.mrb[0].mxu0
        %v630 = vadd.f32 %v335, %v629
        %v631 = vpop.f32.mrb[0].mxu0
        %v632 = vadd.f32 %v339, %v631
        %633 = vmatprep.mubr.bf16.mxu0 0
        %634 = vmatmul.mubr.bf16.gmra.mrb[0].mxu0 %v498
        %v635 = vpop.f32.mrb[0].mxu0
        %v636 = vadd.f32 %v335, %v635
        %v637 = vpop.f32.mrb[0].mxu0
        %v638 = vadd.f32 %v339, %v637
        %v639 = vpop.f32.mrb[0].mxu0
        %v640 = vadd.f32 %v335, %v639
        %v641 = vpop.f32.mrb[0].mxu0
        %v642 = vadd.f32 %v339, %v641
        %643 = vmatprep.mubr.bf16.mxu0 0
        %644 = vmatmul.mubr.bf16.gmra.mrb[0].mxu0 %v501
        %v645 = vpop.f32.mrb[0].mxu0
        %v646 = vadd.f32 %v335, %v645
        %v647 = vpop.f32.mrb[0].mxu0
        %v648 = vadd.f32 %v339, %v647
        %v649 = vpop.f32.mrb[0].mxu0
        %v650 = vadd.f32 %v335, %v649
        %v651 = vpop.f32.mrb[0].mxu0
        %v652 = vadd.f32 %v339, %v651
        %653 = vmatprep.mubr.bf16.mxu0 0
        %654 = vmatmul.mubr.bf16.gmra.mrb[0].mxu0 %v504
        %v655 = vpop.f32.mrb[0].mxu0
        %v656 = vadd.f32 %v335, %v655
        %v657 = vpop.f32.mrb[0].mxu0
        %v658 = vadd.f32 %v339, %v657
        %v659 = vpop.f32.mrb[0].mxu0
        %v660 = vadd.f32 %v335, %v659
        %v661 = vpop.f32.mrb[0].mxu0
        %v662 = vadd.f32 %v339, %v661
        %663 = vmatprep.mubr.bf16.mxu0 0
        %664 = vmatmul.mubr.bf16.gmra.mrb[0].mxu0 %v507
        %v665 = vpop.f32.mrb[0].mxu0
        %v666 = vadd.f32 %v335, %v665
        %v667 = vpop.f32.mrb[0].mxu0
        %v668 = vadd.f32 %v339, %v667
        %v669 = vpop.f32.mrb[0].mxu0
        %v670 = vadd.f32 %v335, %v669
        %v671 = vpop.f32.mrb[0].mxu0
        %v672 = vadd.f32 %v339, %v671
        %673 = vmatprep.mubr.bf16.mxu0 0
        %674 = vmatmul.mubr.bf16.gmra.mrb[0].mxu0 %v510
        %v675 = vpop.f32.mrb[0].mxu0
        %v676 = vadd.f32 %v335, %v675
        %v677 = vpop.f32.mrb[0].mxu0
        %v678 = vadd.f32 %v339, %v677
        %v679 = vpop.f32.mrb[0].mxu0
        %v680 = vadd.f32 %v335, %v679
        %v681 = vpop.f32.mrb[0].mxu0
        %v682 = vadd.f32 %v339, %v681
        %683 = vmatprep.mubr.bf16.mxu0 0
        %684 = vmatmul.mubr.bf16.gmra.mrb[0].mxu0 %v513
        %v685 = vpop.f32.mrb[0].mxu0
        %v686 = vadd.f32 %v335, %v685
        %v687 = vpop.f32.mrb[0].mxu0
        %v688 = vadd.f32 %v339, %v687
        %v689 = vpop.f32.mrb[0].mxu0
        %v690 = vadd.f32 %v335, %v689
        %v691 = vpop.f32.mrb[0].mxu0
        %v692 = vadd.f32 %v339, %v691
        %693 = vmatprep.mubr.bf16.mxu0 0
        %694 = vmatmul.mubr.bf16.gmra.mrb[0].mxu0 %v516
        %v695 = vpop.f32.mrb[0].mxu0
        %v696 = vadd.f32 %v335, %v695
        %v697 = vpop.f32.mrb[0].mxu0
        %v698 = vadd.f32 %v339, %v697
        %v699 = vpop.f32.mrb[0].mxu0
        %v700 = vadd.f32 %v335, %v699
        %v701 = vpop.f32.mrb[0].mxu0
        %v702 = vadd.f32 %v339, %v701
        %703 = vmatprep.mubr.bf16.mxu0 0
        %704 = vmatmul.mubr.bf16.gmra.mrb[0].mxu0 %v519
        %v705 = vpop.f32.mrb[0].mxu0
        %v706 = vadd.f32 %v335, %v705
        %v707 = vpop.f32.mrb[0].mxu0
        %v708 = vadd.f32 %v339, %v707
        %v709 = vpop.f32.mrb[0].mxu0
        %v710 = vadd.f32 %v335, %v709
        %v711 = vpop.f32.mrb[0].mxu0
        %v712 = vadd.f32 %v339, %v711
        %713 = vdwg.mxu0
        %714 = vmatprep.subr.bf16.mxu0 %v459
        %715 = vmatpush1.bf16.msra.mxu0 %v458
        %716 = vmatprep.subr.bf16.mxu0 %v463
        %717 = vmatpush1.bf16.msra.mxu0 %v462
        %718 = vmatprep.subr.bf16.mxu0 0
        %719 = vmatpush1.bf16.msra.mxu0 0
        %720 = vmatprep.subr.bf16.mxu0 0
        %721 = vmatpush1.bf16.msra.mxu0 0
        %722 = vmatprep.subr.bf16.mxu0 0
        %723 = vmatpush1.bf16.msra.mxu0 0
        %724 = vmatprep.subr.bf16.mxu0 0
        %725 = vmatpush1.bf16.msra.mxu0 0
        %726 = vmatprep.subr.bf16.mxu0 0
        %727 = vmatpush1.bf16.msra.mxu0 0
        %728 = vmatprep.subr.bf16.mxu0 0
        %729 = vmatpush1.bf16.msra.mxu0 0
        %730 = vmatprep.subr.bf16.mxu0 0
        %731 = vmatpush1.bf16.msra.mxu0 0
        %732 = vmatprep.subr.bf16.mxu0 0
        %733 = vmatpush1.bf16.msra.mxu0 0
        %734 = vmatprep.subr.bf16.mxu0 0
        %735 = vmatpush1.bf16.msra.mxu0 0
        %736 = vmatprep.subr.bf16.mxu0 0
        %737 = vmatpush1.bf16.msra.mxu0 0
        %738 = vmatprep.subr.bf16.mxu0 0
        %739 = vmatpush1.bf16.msra.mxu0 0
        %740 = vmatprep.subr.bf16.mxu0 0
        %741 = vmatpush1.bf16.msra.mxu0 0
        %742 = vmatprep.subr.bf16.mxu0 0
        %743 = vmatpush1.bf16.msra.mxu0 0
        %744 = vmatprep.subr.bf16.mxu0 0
        %745 = vmatpush1.bf16.msra.mxu0 0
        %746 = vmatprep.mubr.bf16.mxu0 0
        %747 = vmatmul.mubr.bf16.gmra.mrb[0].mxu0 %v474
        %v748 = vpop.f32.mrb[0].mxu0
        %v749 = vadd.f32 %v343, %v748
        %v750 = vpop.f32.mrb[0].mxu0
        %v751 = vadd.f32 %v347, %v750
        %v752 = vpop.f32.mrb[0].mxu0
        %v753 = vadd.f32 %v343, %v752
        %v754 = vpop.f32.mrb[0].mxu0
        %v755 = vadd.f32 %v347, %v754
        %756 = vmatprep.mubr.bf16.mxu0 0
        %757 = vmatmul.mubr.bf16.gmra.mrb[0].mxu0 %v477
        %v758 = vpop.f32.mrb[0].mxu0
        %v759 = vadd.f32 %v343, %v758
        %v760 = vpop.f32.mrb[0].mxu0
        %v761 = vadd.f32 %v347, %v760
        %v762 = vpop.f32.mrb[0].mxu0
        %v763 = vadd.f32 %v343, %v762
        %v764 = vpop.f32.mrb[0].mxu0
        %v765 = vadd.f32 %v347, %v764
        %766 = vmatprep.mubr.bf16.mxu0 0
        %767 = vmatmul.mubr.bf16.gmra.mrb[0].mxu0 %v480
        %v768 = vpop.f32.mrb[0].mxu0
        %v769 = vadd.f32 %v343, %v768
        %v770 = vpop.f32.mrb[0].mxu0
        %v771 = vadd.f32 %v347, %v770
        %v772 = vpop.f32.mrb[0].mxu0
        %v773 = vadd.f32 %v343, %v772
        %v774 = vpop.f32.mrb[0].mxu0
        %v775 = vadd.f32 %v347, %v774
        %776 = vmatprep.mubr.bf16.mxu0 0
        %777 = vmatmul.mubr.bf16.gmra.mrb[0].mxu0 %v483
        %v778 = vpop.f32.mrb[0].mxu0
        %v779 = vadd.f32 %v343, %v778
        %v780 = vpop.f32.mrb[0].mxu0
        %v781 = vadd.f32 %v347, %v780
        %v782 = vpop.f32.mrb[0].mxu0
        %v783 = vadd.f32 %v343, %v782
        %v784 = vpop.f32.mrb[0].mxu0
        %v785 = vadd.f32 %v347, %v784
        %786 = vmatprep.mubr.bf16.mxu0 0
        %787 = vmatmul.mubr.bf16.gmra.mrb[0].mxu0 %v486
        %v788 = vpop.f32.mrb[0].mxu0
        %v789 = vadd.f32 %v343, %v788
        %v790 = vpop.f32.mrb[0].mxu0
        %v791 = vadd.f32 %v347, %v790
        %v792 = vpop.f32.mrb[0].mxu0
        %v793 = vadd.f32 %v343, %v792
        %v794 = vpop.f32.mrb[0].mxu0
        %v795 = vadd.f32 %v347, %v794
        %796 = vmatprep.mubr.bf16.mxu0 0
        %797 = vmatmul.mubr.bf16.gmra.mrb[0].mxu0 %v489
        %v798 = vpop.f32.mrb[0].mxu0
        %v799 = vadd.f32 %v343, %v798
        %v800 = vpop.f32.mrb[0].mxu0
        %v801 = vadd.f32 %v347, %v800
        %v802 = vpop.f32.mrb[0].mxu0
        %v803 = vadd.f32 %v343, %v802
        %v804 = vpop.f32.mrb[0].mxu0
        %v805 = vadd.f32 %v347, %v804
        %806 = vmatprep.mubr.bf16.mxu0 0
        %807 = vmatmul.mubr.bf16.gmra.mrb[0].mxu0 %v492
        %v808 = vpop.f32.mrb[0].mxu0
        %v809 = vadd.f32 %v343, %v808
        %v810 = vpop.f32.mrb[0].mxu0
        %v811 = vadd.f32 %v347, %v810
        %v812 = vpop.f32.mrb[0].mxu0
        %v813 = vadd.f32 %v343, %v812
        %v814 = vpop.f32.mrb[0].mxu0
        %v815 = vadd.f32 %v347, %v814
        %816 = vmatprep.mubr.bf16.mxu0 0
        %817 = vmatmul.mubr.bf16.gmra.mrb[0].mxu0 %v495
        %v818 = vpop.f32.mrb[0].mxu0
        %v819 = vadd.f32 %v343, %v818
        %v820 = vpop.f32.mrb[0].mxu0
        %v821 = vadd.f32 %v347, %v820
        %v822 = vpop.f32.mrb[0].mxu0
        %v823 = vadd.f32 %v343, %v822
        %v824 = vpop.f32.mrb[0].mxu0
        %v825 = vadd.f32 %v347, %v824
        %826 = vmatprep.mubr.bf16.mxu0 0
        %827 = vmatmul.mubr.bf16.gmra.mrb[0].mxu0 %v498
        %v828 = vpop.f32.mrb[0].mxu0
        %v829 = vadd.f32 %v343, %v828
        %v830 = vpop.f32.mrb[0].mxu0
        %v831 = vadd.f32 %v347, %v830
        %v832 = vpop.f32.mrb[0].mxu0
        %v833 = vadd.f32 %v343, %v832
        %v834 = vpop.f32.mrb[0].mxu0
        %v835 = vadd.f32 %v347, %v834
        %836 = vmatprep.mubr.bf16.mxu0 0
        %837 = vmatmul.mubr.bf16.gmra.mrb[0].mxu0 %v501
        %v838 = vpop.f32.mrb[0].mxu0
        %v839 = vadd.f32 %v343, %v838
        %v840 = vpop.f32.mrb[0].mxu0
        %v841 = vadd.f32 %v347, %v840
        %v842 = vpop.f32.mrb[0].mxu0
        %v843 = vadd.f32 %v343, %v842
        %v844 = vpop.f32.mrb[0].mxu0
        %v845 = vadd.f32 %v347, %v844
        %846 = vmatprep.mubr.bf16.mxu0 0
        %847 = vmatmul.mubr.bf16.gmra.mrb[0].mxu0 %v504
        %v848 = vpop.f32.mrb[0].mxu0
        %v849 = vadd.f32 %v343, %v848
        %v850 = vpop.f32.mrb[0].mxu0
        %v851 = vadd.f32 %v347, %v850
        %v852 = vpop.f32.mrb[0].mxu0
        %v853 = vadd.f32 %v343, %v852
        %v854 = vpop.f32.mrb[0].mxu0
        %v855 = vadd.f32 %v347, %v854
        %856 = vmatprep.mubr.bf16.mxu0 0
        %857 = vmatmul.mubr.bf16.gmra.mrb[0].mxu0 %v507
        %v858 = vpop.f32.mrb[0].mxu0
        %v859 = vadd.f32 %v343, %v858
        %v860 = vpop.f32.mrb[0].mxu0
        %v861 = vadd.f32 %v347, %v860
        %v862 = vpop.f32.mrb[0].mxu0
        %v863 = vadd.f32 %v343, %v862
        %v864 = vpop.f32.mrb[0].mxu0
        %v865 = vadd.f32 %v347, %v864
        %866 = vmatprep.mubr.bf16.mxu0 0
        %867 = vmatmul.mubr.bf16.gmra.mrb[0].mxu0 %v510
        %v868 = vpop.f32.mrb[0].mxu0
        %v869 = vadd.f32 %v343, %v868
        %v870 = vpop.f32.mrb[0].mxu0
        %v871 = vadd.f32 %v347, %v870
        %v872 = vpop.f32.mrb[0].mxu0
        %v873 = vadd.f32 %v343, %v872
        %v874 = vpop.f32.mrb[0].mxu0
        %v875 = vadd.f32 %v347, %v874
        %876 = vmatprep.mubr.bf16.mxu0 0
        %877 = vmatmul.mubr.bf16.gmra.mrb[0].mxu0 %v513
        %v878 = vpop.f32.mrb[0].mxu0
        %v879 = vadd.f32 %v343, %v878
        %v880 = vpop.f32.mrb[0].mxu0
        %v881 = vadd.f32 %v347, %v880
        %v882 = vpop.f32.mrb[0].mxu0
        %v883 = vadd.f32 %v343, %v882
        %v884 = vpop.f32.mrb[0].mxu0
        %v885 = vadd.f32 %v347, %v884
        %886 = vmatprep.mubr.bf16.mxu0 0
        %887 = vmatmul.mubr.bf16.gmra.mrb[0].mxu0 %v516
        %v888 = vpop.f32.mrb[0].mxu0
        %v889 = vadd.f32 %v343, %v888
        %v890 = vpop.f32.mrb[0].mxu0
        %v891 = vadd.f32 %v347, %v890
        %v892 = vpop.f32.mrb[0].mxu0
        %v893 = vadd.f32 %v343, %v892
        %v894 = vpop.f32.mrb[0].mxu0
        %v895 = vadd.f32 %v347, %v894
        %896 = vmatprep.mubr.bf16.mxu0 0
        %897 = vmatmul.mubr.bf16.gmra.mrb[0].mxu0 %v519
        %v898 = vpop.f32.mrb[0].mxu0
        %v899 = vadd.f32 %v343, %v898
        %v900 = vpop.f32.mrb[0].mxu0
        %v901 = vadd.f32 %v347, %v900
        %v902 = vpop.f32.mrb[0].mxu0
        %v903 = vadd.f32 %v343, %v902
        %v904 = vpop.f32.mrb[0].mxu0
        %v905 = vadd.f32 %v347, %v904
        %906 = vdwg.mxu0
        %v907 = vmax.f32 %v556, 0.0
        %v908 = vmax.f32 %v558, 0.0
        %v909 = vmax.f32 %v749, 0.0
        %v910 = vmax.f32 %v751, 0.0
        %v911 = vmax.f32 %v560, 0.0
        %v912 = vmax.f32 %v562, 0.0
        %v913 = vmax.f32 %v753, 0.0
        %v914 = vmax.f32 %v755, 0.0
        %v915 = vmax.f32 %v566, 0.0
        %v916 = vmax.f32 %v568, 0.0
        %v917 = vmax.f32 %v759, 0.0
        %v918 = vmax.f32 %v761, 0.0
        %v919 = vmax.f32 %v570, 0.0
        %v920 = vmax.f32 %v572, 0.0
        %v921 = vmax.f32 %v763, 0.0
        %v922 = vmax.f32 %v765, 0.0
        %v923 = vmax.f32 %v576, 0.0
        %v924 = vmax.f32 %v578, 0.0
        %v925 = vmax.f32 %v769, 0.0
        %v926 = vmax.f32 %v771, 0.0
        %v927 = vmax.f32 %v580, 0.0
        %v928 = vmax.f32 %v582, 0.0
        %v929 = vmax.f32 %v773, 0.0
        %v930 = vmax.f32 %v775, 0.0
        %v931 = vmax.f32 %v586, 0.0
        %v932 = vmax.f32 %v588, 0.0
        %v933 = vmax.f32 %v779, 0.0
        %v934 = vmax.f32 %v781, 0.0
        %v935 = vmax.f32 %v590, 0.0
        %v936 = vmax.f32 %v592, 0.0
        %v937 = vmax.f32 %v783, 0.0
        %v938 = vmax.f32 %v785, 0.0
        %v939 = vmax.f32 %v596, 0.0
        %v940 = vmax.f32 %v598, 0.0
        %v941 = vmax.f32 %v789, 0.0
        %v942 = vmax.f32 %v791, 0.0
        %v943 = vmax.f32 %v600, 0.0
        %v944 = vmax.f32 %v602, 0.0
        %v945 = vmax.f32 %v793, 0.0
        %v946 = vmax.f32 %v795, 0.0
        %v947 = vmax.f32 %v606, 0.0
        %v948 = vmax.f32 %v608, 0.0
        %v949 = vmax.f32 %v799, 0.0
        %v950 = vmax.f32 %v801, 0.0
        %v951 = vmax.f32 %v610, 0.0
        %v952 = vmax.f32 %v612, 0.0
        %v953 = vmax.f32 %v803, 0.0
        %v954 = vmax.f32 %v805, 0.0
        %v955 = vmax.f32 %v616, 0.0
        %v956 = vmax.f32 %v618, 0.0
        %v957 = vmax.f32 %v809, 0.0
        %v958 = vmax.f32 %v811, 0.0
        %v959 = vmax.f32 %v620, 0.0
        %v960 = vmax.f32 %v622, 0.0
        %v961 = vmax.f32 %v813, 0.0
        %v962 = vmax.f32 %v815, 0.0
        %v963 = vmax.f32 %v626, 0.0
        %v964 = vmax.f32 %v628, 0.0
        %v965 = vmax.f32 %v819, 0.0
        %v966 = vmax.f32 %v821, 0.0
        %v967 = vmax.f32 %v630, 0.0
        %v968 = vmax.f32 %v632, 0.0
        %v969 = vmax.f32 %v823, 0.0
        %v970 = vmax.f32 %v825, 0.0
        %v971 = vmax.f32 %v636, 0.0
        %v972 = vmax.f32 %v638, 0.0
        %v973 = vmax.f32 %v829, 0.0
        %v974 = vmax.f32 %v831, 0.0
        %v975 = vmax.f32 %v640, 0.0
        %v976 = vmax.f32 %v642, 0.0
        %v977 = vmax.f32 %v833, 0.0
        %v978 = vmax.f32 %v835, 0.0
        %v979 = vmax.f32 %v646, 0.0
        %v980 = vmax.f32 %v648, 0.0
        %v981 = vmax.f32 %v839, 0.0
        %v982 = vmax.f32 %v841, 0.0
        %v983 = vmax.f32 %v650, 0.0
        %v984 = vmax.f32 %v652, 0.0
        %v985 = vmax.f32 %v843, 0.0
        %v986 = vmax.f32 %v845, 0.0
        %v987 = vmax.f32 %v656, 0.0
        %v988 = vmax.f32 %v658, 0.0
        %v989 = vmax.f32 %v849, 0.0
        %v990 = vmax.f32 %v851, 0.0
        %v991 = vmax.f32 %v660, 0.0
        %v992 = vmax.f32 %v662, 0.0
        %v993 = vmax.f32 %v853, 0.0
        %v994 = vmax.f32 %v855, 0.0
        %v995 = vmax.f32 %v666, 0.0
        %v996 = vmax.f32 %v668, 0.0
        %v997 = vmax.f32 %v859, 0.0
        %v998 = vmax.f32 %v861, 0.0
        %v999 = vmax.f32 %v670, 0.0
        %v1000 = vmax.f32 %v672, 0.0
        %v1001 = vmax.f32 %v863, 0.0
        %v1002 = vmax.f32 %v865, 0.0
        %v1003 = vmax.f32 %v676, 0.0
        %v1004 = vmax.f32 %v678, 0.0
        %v1005 = vmax.f32 %v869, 0.0
        %v1006 = vmax.f32 %v871, 0.0
        %v1007 = vmax.f32 %v680, 0.0
        %v1008 = vmax.f32 %v682, 0.0
        %v1009 = vmax.f32 %v873, 0.0
        %v1010 = vmax.f32 %v875, 0.0
        %v1011 = vmax.f32 %v686, 0.0
        %v1012 = vmax.f32 %v688, 0.0
        %v1013 = vmax.f32 %v879, 0.0
        %v1014 = vmax.f32 %v881, 0.0
        %v1015 = vmax.f32 %v690, 0.0
        %v1016 = vmax.f32 %v692, 0.0
        %v1017 = vmax.f32 %v883, 0.0
        %v1018 = vmax.f32 %v885, 0.0
        %v1019 = vmax.f32 %v696, 0.0
        %v1020 = vmax.f32 %v698, 0.0
        %v1021 = vmax.f32 %v889, 0.0
        %v1022 = vmax.f32 %v891, 0.0
        %v1023 = vmax.f32 %v700, 0.0
        %v1024 = vmax.f32 %v702, 0.0
        %v1025 = vmax.f32 %v893, 0.0
        %v1026 = vmax.f32 %v895, 0.0
        %v1027 = vmax.f32 %v706, 0.0
        %v1028 = vmax.f32 %v708, 0.0
        %v1029 = vmax.f32 %v899, 0.0
        %v1030 = vmax.f32 %v901, 0.0
        %v1031 = vmax.f32 %v710, 0.0
        %v1032 = vmax.f32 %v712, 0.0
        %v1033 = vmax.f32 %v903, 0.0
        %v1034 = vmax.f32 %v905, 0.0
        %v1035 = vld [vmem:[#allocation2] sm:$0xff]
        %v1036 = vld [vmem:[#allocation2 + $0x8] sm:$0xff]
        %v1037 = vld [vmem:[#allocation2 + $0x10] sm:$0xff]
        %v1038 = vld [vmem:[#allocation2 + $0x18] sm:$0xff]
        %v1039 = vadd.f32 %v907, %v911
        %v1040 = vadd.f32 %v1039, %v915
        %v1041 = vadd.f32 %v1040, %v919
        %v1042 = vadd.f32 %v1041, %v923
        %v1043 = vadd.f32 %v1042, %v927
        %v1044 = vadd.f32 %v1043, %v931
        %v1045 = vadd.f32 %v1044, %v935
        %v1046 = vadd.f32 %v1045, %v939
        %v1047 = vadd.f32 %v1046, %v943
        %v1048 = vadd.f32 %v1047, %v947
        %v1049 = vadd.f32 %v1048, %v951
        %v1050 = vadd.f32 %v1049, %v955
        %v1051 = vadd.f32 %v1050, %v959
        %v1052 = vadd.f32 %v1051, %v963
        %v1053 = vadd.f32 %v1052, %v967
        %v1054 = vadd.f32 %v1053, %v971
        %v1055 = vadd.f32 %v1054, %v975
        %v1056 = vadd.f32 %v1055, %v979
        %v1057 = vadd.f32 %v1056, %v983
        %v1058 = vadd.f32 %v1057, %v987
        %v1059 = vadd.f32 %v1058, %v991
        %v1060 = vadd.f32 %v1059, %v995
        %v1061 = vadd.f32 %v1060, %v999
        %v1062 = vadd.f32 %v1061, %v1003
        %v1063 = vadd.f32 %v1062, %v1007
        %v1064 = vadd.f32 %v1063, %v1011
        %v1065 = vadd.f32 %v1064, %v1015
        %v1066 = vadd.f32 %v1065, %v1019
        %v1067 = vadd.f32 %v1066, %v1023
        %v1068 = vadd.f32 %v1067, %v1027
        %v1069 = vadd.f32 %v1068, %v1031
        %v1070 = vadd.f32 %v908, %v912
        %v1071 = vadd.f32 %v1070, %v916
        %v1072 = vadd.f32 %v1071, %v920
        %v1073 = vadd.f32 %v1072, %v924
        %v1074 = vadd.f32 %v1073, %v928
        %v1075 = vadd.f32 %v1074, %v932
        %v1076 = vadd.f32 %v1075, %v936
        %v1077 = vadd.f32 %v1076, %v940
        %v1078 = vadd.f32 %v1077, %v944
        %v1079 = vadd.f32 %v1078, %v948
        %v1080 = vadd.f32 %v1079, %v952
        %v1081 = vadd.f32 %v1080, %v956
        %v1082 = vadd.f32 %v1081, %v960
        %v1083 = vadd.f32 %v1082, %v964
        %v1084 = vadd.f32 %v1083, %v968
        %v1085 = vadd.f32 %v1084, %v972
        %v1086 = vadd.f32 %v1085, %v976
        %v1087 = vadd.f32 %v1086, %v980
        %v1088 = vadd.f32 %v1087, %v984
        %v1089 = vadd.f32 %v1088, %v988
        %v1090 = vadd.f32 %v1089, %v992
        %v1091 = vadd.f32 %v1090, %v996
        %v1092 = vadd.f32 %v1091, %v1000
        %v1093 = vadd.f32 %v1092, %v1004
        %v1094 = vadd.f32 %v1093, %v1008
        %v1095 = vadd.f32 %v1094, %v1012
        %v1096 = vadd.f32 %v1095, %v1016
        %v1097 = vadd.f32 %v1096, %v1020
        %v1098 = vadd.f32 %v1097, %v1024
        %v1099 = vadd.f32 %v1098, %v1028
        %v1100 = vadd.f32 %v1099, %v1032
        %v1101 = vadd.f32 %v909, %v913
        %v1102 = vadd.f32 %v1101, %v917
        %v1103 = vadd.f32 %v1102, %v921
        %v1104 = vadd.f32 %v1103, %v925
        %v1105 = vadd.f32 %v1104, %v929
        %v1106 = vadd.f32 %v1105, %v933
        %v1107 = vadd.f32 %v1106, %v937
        %v1108 = vadd.f32 %v1107, %v941
        %v1109 = vadd.f32 %v1108, %v945
        %v1110 = vadd.f32 %v1109, %v949
        %v1111 = vadd.f32 %v1110, %v953
        %v1112 = vadd.f32 %v1111, %v957
        %v1113 = vadd.f32 %v1112, %v961
        %v1114 = vadd.f32 %v1113, %v965
        %v1115 = vadd.f32 %v1114, %v969
        %v1116 = vadd.f32 %v1115, %v973
        %v1117 = vadd.f32 %v1116, %v977
        %v1118 = vadd.f32 %v1117, %v981
        %v1119 = vadd.f32 %v1118, %v985
        %v1120 = vadd.f32 %v1119, %v989
        %v1121 = vadd.f32 %v1120, %v993
        %v1122 = vadd.f32 %v1121, %v997
        %v1123 = vadd.f32 %v1122, %v1001
        %v1124 = vadd.f32 %v1123, %v1005
        %v1125 = vadd.f32 %v1124, %v1009
        %v1126 = vadd.f32 %v1125, %v1013
        %v1127 = vadd.f32 %v1126, %v1017
        %v1128 = vadd.f32 %v1127, %v1021
        %v1129 = vadd.f32 %v1128, %v1025
        %v1130 = vadd.f32 %v1129, %v1029
        %v1131 = vadd.f32 %v1130, %v1033
        %v1132 = vadd.f32 %v910, %v914
        %v1133 = vadd.f32 %v1132, %v918
        %v1134 = vadd.f32 %v1133, %v922
        %v1135 = vadd.f32 %v1134, %v926
        %v1136 = vadd.f32 %v1135, %v930
        %v1137 = vadd.f32 %v1136, %v934
        %v1138 = vadd.f32 %v1137, %v938
        %v1139 = vadd.f32 %v1138, %v942
        %v1140 = vadd.f32 %v1139, %v946
        %v1141 = vadd.f32 %v1140, %v950
        %v1142 = vadd.f32 %v1141, %v954
        %v1143 = vadd.f32 %v1142, %v958
        %v1144 = vadd.f32 %v1143, %v962
        %v1145 = vadd.f32 %v1144, %v966
        %v1146 = vadd.f32 %v1145, %v970
        %v1147 = vadd.f32 %v1146, %v974
        %v1148 = vadd.f32 %v1147, %v978
        %v1149 = vadd.f32 %v1148, %v982
        %v1150 = vadd.f32 %v1149, %v986
        %v1151 = vadd.f32 %v1150, %v990
        %v1152 = vadd.f32 %v1151, %v994
        %v1153 = vadd.f32 %v1152, %v998
        %v1154 = vadd.f32 %v1153, %v1002
        %v1155 = vadd.f32 %v1154, %v1006
        %v1156 = vadd.f32 %v1155, %v1010
        %v1157 = vadd.f32 %v1156, %v1014
        %v1158 = vadd.f32 %v1157, %v1018
        %v1159 = vadd.f32 %v1158, %v1022
        %v1160 = vadd.f32 %v1159, %v1026
        %v1161 = vadd.f32 %v1160, %v1030
        %v1162 = vadd.f32 %v1161, %v1034
        %v1163 = vadd.f32 %v1035, %v1069
        %v1164 = vadd.f32 %v1036, %v1100
        %v1165 = vadd.f32 %v1037, %v1131
        %v1166 = vadd.f32 %v1038, %v1162
        %1167 = vst [vmem:[#allocation2] sm:$0xff] %v1163
        %1168 = vst [vmem:[#allocation2 + $0x8] sm:$0xff] %v1164
        %1169 = vst [vmem:[#allocation2 + $0x10] sm:$0xff] %v1165
        %1170 = vst [vmem:[#allocation2 + $0x18] sm:$0xff] %v1166
        // Predicated region
        $region60: #{tpu_custom_call.1} parent=50 // pred_check
          %p1171 = pneg %p282
        $region61: #{tpu_custom_call.1} parent=50 // pred_check_branch
          %1173 = sbr.rel (%p1171) target = $region63
        $region62: #{tpu_custom_call.1} parent=50 // pred_region
          %v1174 = vld [vmem:[#allocation2] sm:$0xff]
          %v1175 = vld [vmem:[#allocation2 + $0x8] sm:$0xff]
          %v1176 = vld [vmem:[#allocation2 + $0x10] sm:$0xff]
          %v1177 = vld [vmem:[#allocation2 + $0x18] sm:$0xff]
          %v1178 = vrot.slane %v1174, 4
          %v1179 = vadd.f32 %v1174, %v1178
          %v1180 = vrot.slane %v1179, 2
          %v1181 = vadd.f32 %v1179, %v1180
          %v1182 = vrot.slane %v1181, 1
          %v1183 = vadd.f32 %v1181, %v1182
          %v1184 = vrot.slane %v1175, 4
          %v1185 = vadd.f32 %v1175, %v1184
          %v1186 = vrot.slane %v1185, 2
          %v1187 = vadd.f32 %v1185, %v1186
          %v1188 = vrot.slane %v1187, 1
          %v1189 = vadd.f32 %v1187, %v1188
          %v1190 = vrot.slane %v1176, 4
          %v1191 = vadd.f32 %v1176, %v1190
          %v1192 = vrot.slane %v1191, 2
          %v1193 = vadd.f32 %v1191, %v1192
          %v1194 = vrot.slane %v1193, 1
          %v1195 = vadd.f32 %v1193, %v1194
          %v1196 = vrot.slane %v1177, 4
          %v1197 = vadd.f32 %v1177, %v1196
          %v1198 = vrot.slane %v1197, 2
          %v1199 = vadd.f32 %v1197, %v1198
          %v1200 = vrot.slane %v1199, 1
          %v1201 = vadd.f32 %v1199, %v1200
          %v1202 = vmul.f32 %v1183, 0.00390625
          %v1203 = vmul.f32 %v1189, 0.00390625
          %v1204 = vmul.f32 %v1195, 0.00390625
          %v1205 = vmul.f32 %v1201, 0.00390625
          %v1210 = vcombine.low %v1202, %v1203
          %v1211 = vcombine.low %v1204, %v1205
          %v1213 = vunpack.c.l.s4 1966171168
          %v1214 = vunpack.c.0.s8 %v1213
          %v1215 = vlaneseq
          %v1216 = vshrl.u32 %v1215, 7
          %v1217 = vsub.s32 %v1214, %v1216
          %v1218 = vrot.slane %v1210, %v1217
          %v1220 = vunpack.c.l.s4 1966171168
          %v1221 = vunpack.c.0.s8 %v1220
          %v1222 = vlaneseq
          %v1223 = vshrl.u32 %v1222, 7
          %v1224 = vsub.s32 %v1221, %v1223
          %v1225 = vrot.slane %v1211, %v1224
          %v1226 = vcombine.low %v1218, %v1225
          %v1228 = vunpack.c.l.s4 1966171168
          %v1229 = vunpack.c.0.s8 %v1228
          %v1230 = vlaneseq
          %v1231 = vshrl.u32 %v1230, 7
          %v1232 = vsub.s32 %v1229, %v1231
          %v1233 = vrot.slane %v1226, %v1232
          %v1235 = vlaneseq
          %vm1236 = vcmp.ge.s32.totalorder %v1235, 0
          %vm1237 = vcmp.lt.s32.totalorder %v1235, 512
          %vm1238 = vmand %vm1236, %vm1237
          %1239 = vst.msk [vmem:[%s263] sm:$0xf] %vm1238, %v1233
        $region63: #{tpu_custom_call.1} parent=50 // pred_fallthru
          _
        %s1240 = sand.u32 %s126, 1
        %s1241 = scalar_lea.sflag [#allocation5], %s1240
        %s1242 = sand.u32 %s126, 1
        %s1243 = smul.addr %s1242, 4
        %s1244 = scalar_lea.vmem [#allocation4], %s1243
        // Predicated region
        $region64: #{tpu_custom_call.1} parent=50 // pred_check
          %p1245 = pneg %p136
        $region65: #{tpu_custom_call.1} parent=50 // pred_check_branch
          %1247 = sbr.rel (%p1245) target = $region67
        $region66: #{tpu_custom_call.1} parent=50 // pred_region
          %s1248 = smul.u32 4, %s23
          %s1250 = ssub.s32 64, 64
          %1251 = vsyncadd %s1241, %s1250
          %s1252 = smul.addr %s22, 16
          %s1253 = sadd.s32 %s1248, %s1252
          %s1254 = smul.addr %s1253, 16
          %s1255 = scalar_lea.hbm %s3, %s1254
          %s1257 = sshll.u32 %s1244, 4
          %s1258 = int_to_ptr.vmem [resolvable:$true] %s1257
          %1260 = dma.vmem_to_hbm [thread:$0]  %s1258, 64, %s1255, %s1241
        $region67: #{tpu_custom_call.1} parent=50 // pred_fallthru
          _
      $region51: #{tpu_custom_call.1} parent=5 // pred_fallthru
        _
      %p1261 = scmp.le.s32.totalorder 2, %s12
      // Predicated region
      $region68: #{tpu_custom_call.1} parent=5 // pred_check
        %p1262 = pneg %p1261
      $region69: #{tpu_custom_call.1} parent=5 // pred_check_branch
        %1264 = sbr.rel (%p1262) target = $region71
      $region70: #{tpu_custom_call.1} parent=5 // pred_region
        %s1265 = ssub.s32 %s12, 2
        // Predicated region
        $region72: #{tpu_custom_call.1} parent=70 // pred_check
          %p1266 = pneg %p142
        $region73: #{tpu_custom_call.1} parent=70 // pred_check_branch
          %1268 = sbr.rel (%p1266) target = $region75
        $region74: #{tpu_custom_call.1} parent=70 // pred_region
          %s1269 = sand.u32 %s127, 1
          %s1270 = scalar_lea.sflag [#allocation5], %s1269
          %s1271 = sand.u32 %s127, 1
          %s1272 = smul.addr %s1271, 4
          %s1273 = scalar_lea.vmem [#allocation4], %s1272
          %1274 = dma.done %s1270, 64
        $region75: #{tpu_custom_call.1} parent=70 // pred_fallthru
          _
      $region71: #{tpu_custom_call.1} parent=5 // pred_fallthru
        _
    $region6: #{tpu_custom_call.1} parent=1 // loop_footer
      %s16 = sadd.s32 1, %s12
    $region7: #{tpu_custom_call.1} parent=1 // loop_footer_branch
      %11 = sbr.rel target = $region3
    $region8: #{tpu_custom_call.1} parent=1 // loop_exit
      _
    %1275 = vsyncpa [#allocation5], 1
    %s1276 = scalar_lea.sflag [#allocation5], 1
    %1277 = vsyncpa %s1276, 1

</llo_original>
